<compile_context>
chip_gen: v7x
topology: tpu7x:2x2x1
jax: 0.10.0
libtpu: 0.0.40
codegen_flags: <defaults>
</compile_context>

<pallas_src>
import functools
import math

import jax
import jax.numpy as jnp
from jax.experimental import pallas as pl
from jax.experimental.pallas import tpu as pltpu


def _round_up(x: int, m: int) -> int:
    return ((x + m - 1) // m) * m


def _fourier_kernel_general(w_ref, x_ref, o_ref, *, num_weights: int):
    """General path: arbitrary (trained) weights, read once from SMEM."""
    x = x_ref[...].astype(jnp.float32)                       # [tile_r, 128]
    ws = [w_ref[i].astype(jnp.float32) for i in range(num_weights)]
    for i in range(num_weights):
        wx = ws[i] * x
        o_ref[2 * i, :, :] = jnp.sin(wx).astype(o_ref.dtype)
        o_ref[2 * i + 1, :, :] = jnp.cos(wx).astype(o_ref.dtype)


def _fourier_kernel_pow2(w_ref, x_ref, o_ref, *, num_weights: int):
    """Fast path for w_i == 2**i exactly (double-angle recurrence).

    sin(2t) = 2 sin(t) cos(t); cos(2t) = 1 - 2 sin(t)^2  ->  only 2
    transcendental evaluations per element instead of 2 * num_weights.
    """
    del w_ref  # weights implied by the recurrence
    x = x_ref[...].astype(jnp.float32)
    s = jnp.sin(x)
    c = jnp.cos(x)
    for i in range(num_weights):
        o_ref[2 * i, :, :] = s.astype(o_ref.dtype)
        o_ref[2 * i + 1, :, :] = c.astype(o_ref.dtype)
        if i + 1 < num_weights:
            s, c = 2.0 * s * c, 1.0 - 2.0 * s * s


def fourier_encoder(x: jax.Array, weights: jax.Array, *,
                    pow2_weights: bool = False,
                    tile_rows: int = 512) -> jax.Array:
    """Pallas FourierEncoder forward.

    x:       float array [..., D]
    weights: float array [W]   (module initializes them to 2**i)
    returns: float array [..., 2*W*D], concat order sin(w0 x), cos(w0 x), ...
    """
    orig_shape = x.shape
    feat = orig_shape[-1]
    num_weights = int(weights.shape[0])
    nslab = 2 * num_weights
    out_feat = nslab * feat
    dtype = x.dtype

    n = math.prod(orig_shape)
    # Lane-dense 2-D view: pad flat x to a whole number of (tile_r, 128) tiles.
    rows_needed = pl.cdiv(n, 128)
    tile_r = min(tile_rows, _round_up(rows_needed, 8))
    rows = _round_up(rows_needed, tile_r)
    n_pad = rows * 128

    x_flat = x.reshape(-1)
    if n_pad != n:
        x_flat = jnp.pad(x_flat, (0, n_pad - n))
    x2d = x_flat.reshape(rows, 128)

    kernel = functools.partial(
        _fourier_kernel_pow2 if pow2_weights else _fourier_kernel_general,
        num_weights=num_weights)

    itemsize = jnp.dtype(dtype).itemsize
    cost = pl.CostEstimate(
        flops=(4 if pow2_weights else 2) * num_weights * n_pad,
        transcendentals=(2 if pow2_weights else nslab) * n_pad,
        bytes_accessed=(1 + nslab) * n_pad * itemsize)

    out_slabs = pl.pallas_call(
        kernel,
        out_shape=jax.ShapeDtypeStruct((nslab, rows, 128), dtype),
        grid=(rows // tile_r,),
        in_specs=[
            pl.BlockSpec(memory_space=pltpu.MemorySpace.SMEM),    # weights
            pl.BlockSpec((tile_r, 128), lambda i: (i, 0)),        # x row tile
        ],
        out_specs=pl.BlockSpec((nslab, tile_r, 128), lambda i: (0, i, 0)),
        compiler_params=pltpu.CompilerParams(
            dimension_semantics=("parallel",),
            vmem_limit_bytes=32 * 1024 * 1024),
        cost_estimate=cost,
    )(weights, x2d)

    # Layout plumbing back to the PyTorch concat order [..., 2*W*D].
    out = out_slabs.reshape(nslab, n_pad)[:, :n]      # (2W, N)
    out = out.reshape(nslab, n // feat, feat)         # (2W, M, D)
    out = jnp.transpose(out, (1, 0, 2))               # (M, 2W, D)
    return out.reshape(*orig_shape[:-1], out_feat)


def fourier_encoder_ref(x: jax.Array, weights: jax.Array) -> jax.Array:
    """Pure-JAX reference matching the PyTorch forward."""
    outs = []
    for i in range(weights.shape[0]):
        outs.append(jnp.sin(weights[i] * x))
        outs.append(jnp.cos(weights[i] * x))
    return jnp.concatenate(outs, axis=-1)


if __name__ == "__main__":
    # FourierEncoder(length=16) -> length // 4 = 4 weights, w_i = 2**i.
    length = 16
    num_weights = length // 4
    weights = jnp.array([2.0 ** i for i in range(num_weights)],
                        dtype=jnp.float32)

    key = jax.random.PRNGKey(0)
    k1, k2 = jax.random.split(key)

    # Small LIIF-style coordinate input.
    x_small = jax.random.uniform(k1, (2, 8, 2), dtype=jnp.float32,
                                 minval=-1.0, maxval=1.0)
    # Larger input with a small tile to exercise the multi-step grid path.
    x_large = jax.random.uniform(k2, (2, 2048, 2), dtype=jnp.float32,
                                 minval=-1.0, maxval=1.0)

    checks = [
        (x_small, weights, dict(pow2_weights=False)),
        (x_small, weights, dict(pow2_weights=True)),
        (x_large, weights, dict(pow2_weights=False, tile_rows=8)),
        (x_large, weights, dict(pow2_weights=True, tile_rows=8)),
        # General path with non-power-of-two ("trained") weights.
        (x_small, weights * 1.37 + 0.11, dict(pow2_weights=False)),
    ]
    for xi, wi, kwargs in checks:
        out = jax.block_until_ready(fourier_encoder(xi, wi, **kwargs))
        ref = fourier_encoder_ref(xi, wi)
        expect = xi.shape[:-1] + (2 * wi.shape[0] * xi.shape[-1],)
        assert out.shape == expect, (out.shape, expect)
        assert jnp.allclose(out, ref, atol=1e-5, rtol=1e-5), \
            f"mismatch vs reference for kwargs={kwargs}"

    print("KERNEL_OK")
</pallas_src>

<mosaic_0001>
module attributes {stable_mosaic.version = 11 : i64} {
  func.func @_fourier_kernel_general(%arg0: i32, %arg1: memref<4xf32, #tpu.memory_space<smem>>, %arg2: memref<8x128xf32, #tpu.memory_space<vmem>>, %arg3: memref<8x8x128xf32, #tpu.memory_space<vmem>>) attributes {dimension_semantics = [#tpu.dimension_semantics<parallel>], iteration_bounds = array<i64: 1>, scalar_prefetch = 0 : i64, scratch_operands = 0 : i64, tpu.core_type = #tpu.core_type<tc>, window_params = [{transform_indices = @transform_0, window_bounds = array<i64: 4>}, {transform_indices = @transform_1, window_bounds = array<i64: 8, 128>}, {transform_indices = @transform_2, window_bounds = array<i64: 8, 8, 128>}]} {
    %c0 = arith.constant 0 : index
    %c0_0 = arith.constant 0 : index
    %0 = vector.load %arg2[%c0, %c0_0] : memref<8x128xf32, #tpu.memory_space<vmem>>, vector<8x128xf32>
    %c0_1 = arith.constant 0 : index
    %1 = memref.load %arg1[%c0_1] : memref<4xf32, #tpu.memory_space<smem>>
    %c1 = arith.constant 1 : index
    %2 = memref.load %arg1[%c1] : memref<4xf32, #tpu.memory_space<smem>>
    %c2 = arith.constant 2 : index
    %3 = memref.load %arg1[%c2] : memref<4xf32, #tpu.memory_space<smem>>
    %c3 = arith.constant 3 : index
    %4 = memref.load %arg1[%c3] : memref<4xf32, #tpu.memory_space<smem>>
    %5 = vector.broadcast %1 : f32 to vector<8x128xf32>
    %6 = arith.mulf %5, %0 : vector<8x128xf32>
    %7 = math.sin %6 : vector<8x128xf32>
    %c0_2 = arith.constant 0 : index
    %c0_3 = arith.constant 0 : index
    %c0_4 = arith.constant 0 : index
    %8 = vector.load %arg3[%c0_2, %c0_3, %c0_4] : memref<8x8x128xf32, #tpu.memory_space<vmem>>, vector<1x8x128xf32>
    %9 = vector.shape_cast %8 : vector<1x8x128xf32> to vector<8x128xf32>
    %10 = vector.shape_cast %7 : vector<8x128xf32> to vector<1x8x128xf32>
    tpu.vector_store %arg3[%c0_2, %c0_3, %c0_4], %10 {strides = array<i32>} : memref<8x8x128xf32, #tpu.memory_space<vmem>>, vector<1x8x128xf32>,
    %11 = math.cos %6 : vector<8x128xf32>
    %c1_5 = arith.constant 1 : index
    %c0_6 = arith.constant 0 : index
    %c0_7 = arith.constant 0 : index
    %12 = vector.load %arg3[%c1_5, %c0_6, %c0_7] : memref<8x8x128xf32, #tpu.memory_space<vmem>>, vector<1x8x128xf32>
    %13 = vector.shape_cast %12 : vector<1x8x128xf32> to vector<8x128xf32>
    %14 = vector.shape_cast %11 : vector<8x128xf32> to vector<1x8x128xf32>
    tpu.vector_store %arg3[%c1_5, %c0_6, %c0_7], %14 {strides = array<i32>} : memref<8x8x128xf32, #tpu.memory_space<vmem>>, vector<1x8x128xf32>,
    %15 = vector.broadcast %2 : f32 to vector<8x128xf32>
    %16 = arith.mulf %15, %0 : vector<8x128xf32>
    %17 = math.sin %16 : vector<8x128xf32>
    %c2_8 = arith.constant 2 : index
    %c0_9 = arith.constant 0 : index
    %c0_10 = arith.constant 0 : index
    %18 = vector.load %arg3[%c2_8, %c0_9, %c0_10] : memref<8x8x128xf32, #tpu.memory_space<vmem>>, vector<1x8x128xf32>
    %19 = vector.shape_cast %18 : vector<1x8x128xf32> to vector<8x128xf32>
    %20 = vector.shape_cast %17 : vector<8x128xf32> to vector<1x8x128xf32>
    tpu.vector_store %arg3[%c2_8, %c0_9, %c0_10], %20 {strides = array<i32>} : memref<8x8x128xf32, #tpu.memory_space<vmem>>, vector<1x8x128xf32>,
    %21 = math.cos %16 : vector<8x128xf32>
    %c3_11 = arith.constant 3 : index
    %c0_12 = arith.constant 0 : index
    %c0_13 = arith.constant 0 : index
    %22 = vector.load %arg3[%c3_11, %c0_12, %c0_13] : memref<8x8x128xf32, #tpu.memory_space<vmem>>, vector<1x8x128xf32>
    %23 = vector.shape_cast %22 : vector<1x8x128xf32> to vector<8x128xf32>
    %24 = vector.shape_cast %21 : vector<8x128xf32> to vector<1x8x128xf32>
    tpu.vector_store %arg3[%c3_11, %c0_12, %c0_13], %24 {strides = array<i32>} : memref<8x8x128xf32, #tpu.memory_space<vmem>>, vector<1x8x128xf32>,
    %25 = vector.broadcast %3 : f32 to vector<8x128xf32>
    %26 = arith.mulf %25, %0 : vector<8x128xf32>
    %27 = math.sin %26 : vector<8x128xf32>
    %c4 = arith.constant 4 : index
    %c0_14 = arith.constant 0 : index
    %c0_15 = arith.constant 0 : index
    %28 = vector.load %arg3[%c4, %c0_14, %c0_15] : memref<8x8x128xf32, #tpu.memory_space<vmem>>, vector<1x8x128xf32>
    %29 = vector.shape_cast %28 : vector<1x8x128xf32> to vector<8x128xf32>
    %30 = vector.shape_cast %27 : vector<8x128xf32> to vector<1x8x128xf32>
    tpu.vector_store %arg3[%c4, %c0_14, %c0_15], %30 {strides = array<i32>} : memref<8x8x128xf32, #tpu.memory_space<vmem>>, vector<1x8x128xf32>,
    %31 = math.cos %26 : vector<8x128xf32>
    %c5 = arith.constant 5 : index
    %c0_16 = arith.constant 0 : index
    %c0_17 = arith.constant 0 : index
    %32 = vector.load %arg3[%c5, %c0_16, %c0_17] : memref<8x8x128xf32, #tpu.memory_space<vmem>>, vector<1x8x128xf32>
    %33 = vector.shape_cast %32 : vector<1x8x128xf32> to vector<8x128xf32>
    %34 = vector.shape_cast %31 : vector<8x128xf32> to vector<1x8x128xf32>
    tpu.vector_store %arg3[%c5, %c0_16, %c0_17], %34 {strides = array<i32>} : memref<8x8x128xf32, #tpu.memory_space<vmem>>, vector<1x8x128xf32>,
    %35 = vector.broadcast %4 : f32 to vector<8x128xf32>
    %36 = arith.mulf %35, %0 : vector<8x128xf32>
    %37 = math.sin %36 : vector<8x128xf32>
    %c6 = arith.constant 6 : index
    %c0_18 = arith.constant 0 : index
    %c0_19 = arith.constant 0 : index
    %38 = vector.load %arg3[%c6, %c0_18, %c0_19] : memref<8x8x128xf32, #tpu.memory_space<vmem>>, vector<1x8x128xf32>
    %39 = vector.shape_cast %38 : vector<1x8x128xf32> to vector<8x128xf32>
    %40 = vector.shape_cast %37 : vector<8x128xf32> to vector<1x8x128xf32>
    tpu.vector_store %arg3[%c6, %c0_18, %c0_19], %40 {strides = array<i32>} : memref<8x8x128xf32, #tpu.memory_space<vmem>>, vector<1x8x128xf32>,
    %41 = math.cos %36 : vector<8x128xf32>
    %c7 = arith.constant 7 : index
    %c0_20 = arith.constant 0 : index
    %c0_21 = arith.constant 0 : index
    %42 = vector.load %arg3[%c7, %c0_20, %c0_21] : memref<8x8x128xf32, #tpu.memory_space<vmem>>, vector<1x8x128xf32>
    %43 = vector.shape_cast %42 : vector<1x8x128xf32> to vector<8x128xf32>
    %44 = vector.shape_cast %41 : vector<8x128xf32> to vector<1x8x128xf32>
    tpu.vector_store %arg3[%c7, %c0_20, %c0_21], %44 {strides = array<i32>} : memref<8x8x128xf32, #tpu.memory_space<vmem>>, vector<1x8x128xf32>,
    return
  }
  func.func @transform_0(%arg0: i32) -> i32 {
    %c0_i32 = arith.constant 0 : i32
    %c0_i32_0 = arith.constant 0 : i32
    return %c0_i32 : i32
  }
  func.func @transform_1(%arg0: i32) -> (i32, i32) {
    %c0_i32 = arith.constant 0 : i32
    %c0_i32_0 = arith.constant 0 : i32
    return %arg0, %c0_i32 : i32, i32
  }
  func.func @transform_2(%arg0: i32) -> (i32, i32, i32) {
    %c0_i32 = arith.constant 0 : i32
    %c0_i32_0 = arith.constant 0 : i32
    %c0_i32_1 = arith.constant 0 : i32
    return %c0_i32, %arg0, %c0_i32_0 : i32, i32, i32
  }
}

</mosaic_0001>

<llo_original>
// kernel: tpu_custom_call.1
$region0: #{tpu_custom_call.1}
  #allocation0 [shape = 'u32[]', space=smem, size = 0x4, offset = 0x4, fixed_abs, tag = 'smem constant byte address 0x4 - core index']
  #allocation1 [shape = 'u32[144,128]{1,0:T(1,128)}', space=vmem, size = 0x12000, scoped, tag = 'internal scratch']
  %s0 = inlined_call_operand.hbm [shape: f32[4], index: 0, kind: input, shape index: {}]
  %s1 = inlined_call_operand.hbm [shape: f32[8,128], index: 1, kind: input, shape index: {}]
  %s2 = inlined_call_operand.hbm [shape: f32[8,8,128], index: 2, kind: output, shape index: {}]
  %s3 = sld [smem:[#allocation0]]
  $region26: #{tpu_custom_call.1} parent=0
    _
  %s5 = ssub.s32 1, %s3
  %s6 = scalar_select 0, %s5, %s3
  $region1: #{tpu_custom_call.1} parent=0
    #allocation2 [shape = 'u8[512]{0}', space=smem, size = 0x200, scoped, tag = 'input window, operand 0, single buffered']
    #allocation3 [shape = 's32[1]{0}', space=sflag, size = 0x4, scoped, tag = 'scoped memory for tpu_custom_call.1']
    #allocation4 [shape = 's32[1]{0}', space=sflag, size = 0x4, scoped, tag = 'scoped memory for tpu_custom_call.1']
    #allocation5 [shape = 's32[1]{0}', space=sflag, size = 0x4, scoped, tag = 'scoped memory for tpu_custom_call.1']
    #allocation6 [shape = 'u8[4096]{0}', space=vmem, size = 0x1000, scoped, tag = 'input window, operand 1, single buffered']
    #allocation7 [shape = 'u8[32768]{0}', space=vmem, size = 0x8000, scoped, tag = 'output window, operand 0, single buffered']
    %7 = vsyncpa [#allocation5], 0
    %8 = vsyncpa [#allocation3], 0
    %9 = vsyncpa [#allocation4], 0
    // Predicated region
    $region2: #{tpu_custom_call.1} parent=1 // pred_check
      _
    $region3: #{tpu_custom_call.1} parent=1 // pred_check_branch
      %11 = sbr.rel (0) target = $region5
    $region4: #{tpu_custom_call.1} parent=1 // pred_region
      %s13 = ssub.s32 16, 16
      %14 = vsyncadd [#allocation5], %s13
      %17 = dma.hbm_to_smem %s0, 16, [#allocation2], [#allocation5]
    $region5: #{tpu_custom_call.1} parent=1 // pred_fallthru
      _
    // Predicated region
    $region6: #{tpu_custom_call.1} parent=1 // pred_check
      _
    $region7: #{tpu_custom_call.1} parent=1 // pred_check_branch
      %19 = sbr.rel (0) target = $region9
    $region8: #{tpu_custom_call.1} parent=1 // pred_region
      %s21 = ssub.s32 128, 128
      %22 = vsyncadd [#allocation3], %s21
      %s24 = sshll.u32 [#allocation6], 4
      %s25 = int_to_ptr.vmem [resolvable:$true] %s24
      %27 = dma.hbm_to_vmem [thread:$0]  %s1, 128, %s25, [#allocation3]
    $region9: #{tpu_custom_call.1} parent=1 // pred_fallthru
      _
    // Predicated region
    $region10: #{tpu_custom_call.1} parent=1 // pred_check
      _
    $region11: #{tpu_custom_call.1} parent=1 // pred_check_branch
      %29 = sbr.rel (0) target = $region13
    $region12: #{tpu_custom_call.1} parent=1 // pred_region
      %30 = dma.done [#allocation5], 16
    $region13: #{tpu_custom_call.1} parent=1 // pred_fallthru
      _
    // Predicated region
    $region14: #{tpu_custom_call.1} parent=1 // pred_check
      _
    $region15: #{tpu_custom_call.1} parent=1 // pred_check_branch
      %32 = sbr.rel (0) target = $region17
    $region16: #{tpu_custom_call.1} parent=1 // pred_region
      %33 = dma.done [#allocation3], 128
    $region17: #{tpu_custom_call.1} parent=1 // pred_fallthru
      _
    %34 = sfence
    %v35 = vld [vmem:[#allocation6] sm:$0xff]
    %s36 = sld [smem:[#allocation2]]
    %s37 = sld [smem:[#allocation2 + $0x1]]
    %s38 = sld [smem:[#allocation2 + $0x2]]
    %s39 = sld [smem:[#allocation2 + $0x3]]
    %v40 = vstv %s36
    %v41 = vmul.f32 %v40, %v35
    %v42 = vand.u32 2147483647, %v41
    %vm43 = vcmp.le.f32.partialorder %v42, 0.7853982
    %vm44 = vcmp.lt.s32.totalorder %v41, 0
    %v45 = vand.u32 %v41, 2139095040
    %v46 = vshrl.u32 %v45, 23
    %v47 = vsub.s32 %v46, 127
    %v48 = vand.u32 2147483647, %v41
    %v49 = vand.u32 %v48, 8388607
    %v50 = vor.u32 %v49, 8388608
    %v51 = vsub.s32 0, %v50
    %v52 = vadd.s32 %v47, 1
    %vm53 = vcmp.gt.s32.totalorder %v52, 0
    %v54 = vsel %vm53, %v52, 0
    %v55 = vshrl.u32 %v54, 5
    %v56 = vand.u32 %v54, 31
    %v57 = vsub.s32 32, %v56
    %v58 = vshrl.u32 683565275, %v57
    %v59 = vshll.u32 683565275, %v56
    %v60 = vshrl.u32 2475754826, %v57
    %v61 = vor.u32 %v59, %v60
    %v62 = vshll.u32 2475754826, %v56
    %v63 = vshrl.u32 2131351028, %v57
    %v64 = vor.u32 %v62, %v63
    %v65 = vshll.u32 2131351028, %v56
    %v66 = vshrl.u32 2102212464, %v57
    %v67 = vor.u32 %v65, %v66
    %v68 = vshll.u32 2102212464, %v56
    %v69 = vshrl.u32 920167782, %v57
    %v70 = vor.u32 %v68, %v69
    %v71 = vshll.u32 920167782, %v56
    %v72 = vshrl.u32 1326507024, %v57
    %v73 = vor.u32 %v71, %v72
    %vm74 = vcmp.lt.s32.totalorder %v55, 1
    %vm75 = vcmp.lt.s32.totalorder %v55, 2
    %vm76 = vcmp.lt.s32.totalorder %v55, 3
    %vm77 = vcmp.lt.s32.totalorder %v55, 4
    %v78 = vsel %vm74, %v58, %v61
    %v79 = vsel %vm77, %v67, 2102212464
    %v80 = vsel %vm76, %v64, %v79
    %v81 = vsel %vm75, %v78, %v80
    %v82 = vsel %vm74, %v61, %v64
    %v83 = vsel %vm77, %v70, 920167782
    %v84 = vsel %vm76, %v67, %v83
    %v85 = vsel %vm75, %v82, %v84
    %v86 = vsel %vm74, %v64, %v67
    %v87 = vsel %vm77, %v73, 1326507024
    %v88 = vsel %vm76, %v70, %v87
    %v89 = vsel %vm75, %v86, %v88
    %v90 = vshll.u32 %v50, 8
    %v91 = vmul.u32.u64.compose %v90, %v89
    %v92 = vextract.low.u32 %v91
    %v93 = vextract.high.u32 %v91
    %v94 = vmul.u32.u64.compose %v90, %v85
    %v95 = vextract.low.u32 %v94
    %v96 = vextract.high.u32 %v94
    %v97 = vmul.u32 %v90, %v81
    %v98 = vadd.s32 %v93, %v95
    %vm99 = vc.u32 %v93, %v95
    %v100 = vadd.s32 %v96, 1
    %v101 = vsel %vm99, %v100, %v96
    %v102 = vadd.s32 %v97, %v101
    %v103 = vadd.s32 %v102, 536870912
    %v104 = vshrl.u32 %v103, 30
    %v105 = vshll.u32 %v104, 30
    %v106 = vsub.s32 %v102, %v105
    %vm107 = vcmp.lt.s32.totalorder %v106, 0
    %v108 = vsub.s32 0, %v106
    %v109 = vsel %vm107, %v108, %v106
    %v110 = vclz %v109
    %v111 = vsub.s32 %v110, 2
    %vm112 = vcmp.gt.s32.totalorder 0, %v111
    %v113 = vsel %vm112, 0, %v111
    %v114 = vsub.s32 32, %v113
    %v115 = vshll.u32 %v106, %v113
    %v116 = vshrl.u32 %v98, %v114
    %v117 = vor.u32 %v115, %v116
    %v118 = vsub.s32 4294967266, %v113
    %v119 = vadd.s32 %v118, 127
    %v120 = vshll.u32 %v119, 23
    %v121 = vor.u32 4788187, %v120
    %v122 = vand.u32 2147483647, %v121
    %v124 = vcvt.s32.f32 %v117
    %v125 = vmul.f32 %v124, %v122
    %v126 = vxor.u32 %v125, 2147483648
    %v127 = vsel %vm44, %v126, %v125
    %v128 = vsub.s32 4, %v104
    %v129 = vsel %vm44, %v128, %v104
    %v130 = vsel %vm43, %v41, %v127
    %v131 = vsel %vm43, 0, %v129
    %v132 = vcosq.f32.pop %v130
    %v133 = vsinq.f32.pop %v130
    %vm134 = vweird.f32 %v41
    %v135 = vadd.s32 %v131, 3
    %v136 = vand.u32 %v135, 3
    %vm137 = vcmp.lt.s32.totalorder %v136, 2
    %vm138 = vcmp.eq.s32.totalorder %v136, 0
    %v139 = vxor.u32 %v133, 2147483648
    %v140 = vsel %vm138, %v132, %v139
    %vm141 = vcmp.eq.s32.totalorder %v136, 2
    %v142 = vxor.u32 %v132, 2147483648
    %v143 = vsel %vm141, %v142, %v133
    %v144 = vsel %vm137, %v140, %v143
    %v145 = vsel %vm134, nan, %v144
    %146 = vst [vmem:[#allocation7] sm:$0xff] %v145
    %v147 = vand.u32 2147483647, %v41
    %vm148 = vcmp.le.f32.partialorder %v147, 0.7853982
    %vm149 = vcmp.lt.s32.totalorder %v41, 0
    %v150 = vand.u32 %v41, 2139095040
    %v151 = vshrl.u32 %v150, 23
    %v152 = vsub.s32 %v151, 127
    %v153 = vand.u32 2147483647, %v41
    %v154 = vand.u32 %v153, 8388607
    %v155 = vor.u32 %v154, 8388608
    %v156 = vsub.s32 0, %v155
    %v157 = vadd.s32 %v152, 1
    %vm158 = vcmp.gt.s32.totalorder %v157, 0
    %v159 = vsel %vm158, %v157, 0
    %v160 = vshrl.u32 %v159, 5
    %v161 = vand.u32 %v159, 31
    %v162 = vsub.s32 32, %v161
    %v163 = vshrl.u32 683565275, %v162
    %v164 = vshll.u32 683565275, %v161
    %v165 = vshrl.u32 2475754826, %v162
    %v166 = vor.u32 %v164, %v165
    %v167 = vshll.u32 2475754826, %v161
    %v168 = vshrl.u32 2131351028, %v162
    %v169 = vor.u32 %v167, %v168
    %v170 = vshll.u32 2131351028, %v161
    %v171 = vshrl.u32 2102212464, %v162
    %v172 = vor.u32 %v170, %v171
    %v173 = vshll.u32 2102212464, %v161
    %v174 = vshrl.u32 920167782, %v162
    %v175 = vor.u32 %v173, %v174
    %v176 = vshll.u32 920167782, %v161
    %v177 = vshrl.u32 1326507024, %v162
    %v178 = vor.u32 %v176, %v177
    %vm179 = vcmp.lt.s32.totalorder %v160, 1
    %vm180 = vcmp.lt.s32.totalorder %v160, 2
    %vm181 = vcmp.lt.s32.totalorder %v160, 3
    %vm182 = vcmp.lt.s32.totalorder %v160, 4
    %v183 = vsel %vm179, %v163, %v166
    %v184 = vsel %vm182, %v172, 2102212464
    %v185 = vsel %vm181, %v169, %v184
    %v186 = vsel %vm180, %v183, %v185
    %v187 = vsel %vm179, %v166, %v169
    %v188 = vsel %vm182, %v175, 920167782
    %v189 = vsel %vm181, %v172, %v188
    %v190 = vsel %vm180, %v187, %v189
    %v191 = vsel %vm179, %v169, %v172
    %v192 = vsel %vm182, %v178, 1326507024
    %v193 = vsel %vm181, %v175, %v192
    %v194 = vsel %vm180, %v191, %v193
    %v195 = vshll.u32 %v155, 8
    %v196 = vmul.u32.u64.compose %v195, %v194
    %v197 = vextract.low.u32 %v196
    %v198 = vextract.high.u32 %v196
    %v199 = vmul.u32.u64.compose %v195, %v190
    %v200 = vextract.low.u32 %v199
    %v201 = vextract.high.u32 %v199
    %v202 = vmul.u32 %v195, %v186
    %v203 = vadd.s32 %v198, %v200
    %vm204 = vc.u32 %v198, %v200
    %v205 = vadd.s32 %v201, 1
    %v206 = vsel %vm204, %v205, %v201
    %v207 = vadd.s32 %v202, %v206
    %v208 = vadd.s32 %v207, 536870912
    %v209 = vshrl.u32 %v208, 30
    %v210 = vshll.u32 %v209, 30
    %v211 = vsub.s32 %v207, %v210
    %vm212 = vcmp.lt.s32.totalorder %v211, 0
    %v213 = vsub.s32 0, %v211
    %v214 = vsel %vm212, %v213, %v211
    %v215 = vclz %v214
    %v216 = vsub.s32 %v215, 2
    %vm217 = vcmp.gt.s32.totalorder 0, %v216
    %v218 = vsel %vm217, 0, %v216
    %v219 = vsub.s32 32, %v218
    %v220 = vshll.u32 %v211, %v218
    %v221 = vshrl.u32 %v203, %v219
    %v222 = vor.u32 %v220, %v221
    %v223 = vsub.s32 4294967266, %v218
    %v224 = vadd.s32 %v223, 127
    %v225 = vshll.u32 %v224, 23
    %v226 = vor.u32 4788187, %v225
    %v227 = vand.u32 2147483647, %v226
    %v229 = vcvt.s32.f32 %v222
    %v230 = vmul.f32 %v229, %v227
    %v231 = vxor.u32 %v230, 2147483648
    %v232 = vsel %vm149, %v231, %v230
    %v233 = vsub.s32 4, %v209
    %v234 = vsel %vm149, %v233, %v209
    %v235 = vsel %vm148, %v41, %v232
    %v236 = vsel %vm148, 0, %v234
    %v237 = vcosq.f32.pop %v235
    %v238 = vsinq.f32.pop %v235
    %vm239 = vweird.f32 %v41
    %v240 = vand.u32 %v236, 3
    %vm241 = vcmp.lt.s32.totalorder %v240, 2
    %vm242 = vcmp.eq.s32.totalorder %v240, 0
    %v243 = vxor.u32 %v238, 2147483648
    %v244 = vsel %vm242, %v237, %v243
    %vm245 = vcmp.eq.s32.totalorder %v240, 2
    %v246 = vxor.u32 %v237, 2147483648
    %v247 = vsel %vm245, %v246, %v238
    %v248 = vsel %vm241, %v244, %v247
    %v249 = vsel %vm239, nan, %v248
    %s250 = scalar_lea.vmem [#allocation7], 8
    %251 = vst [vmem:[%s250] sm:$0xff] %v249
    %v252 = vstv %s37
    %v253 = vmul.f32 %v252, %v35
    %v254 = vand.u32 2147483647, %v253
    %vm255 = vcmp.le.f32.partialorder %v254, 0.7853982
    %vm256 = vcmp.lt.s32.totalorder %v253, 0
    %v257 = vand.u32 %v253, 2139095040
    %v258 = vshrl.u32 %v257, 23
    %v259 = vsub.s32 %v258, 127
    %v260 = vand.u32 2147483647, %v253
    %v261 = vand.u32 %v260, 8388607
    %v262 = vor.u32 %v261, 8388608
    %v263 = vsub.s32 0, %v262
    %v264 = vadd.s32 %v259, 1
    %vm265 = vcmp.gt.s32.totalorder %v264, 0
    %v266 = vsel %vm265, %v264, 0
    %v267 = vshrl.u32 %v266, 5
    %v268 = vand.u32 %v266, 31
    %v269 = vsub.s32 32, %v268
    %v270 = vshrl.u32 683565275, %v269
    %v271 = vshll.u32 683565275, %v268
    %v272 = vshrl.u32 2475754826, %v269
    %v273 = vor.u32 %v271, %v272
    %v274 = vshll.u32 2475754826, %v268
    %v275 = vshrl.u32 2131351028, %v269
    %v276 = vor.u32 %v274, %v275
    %v277 = vshll.u32 2131351028, %v268
    %v278 = vshrl.u32 2102212464, %v269
    %v279 = vor.u32 %v277, %v278
    %v280 = vshll.u32 2102212464, %v268
    %v281 = vshrl.u32 920167782, %v269
    %v282 = vor.u32 %v280, %v281
    %v283 = vshll.u32 920167782, %v268
    %v284 = vshrl.u32 1326507024, %v269
    %v285 = vor.u32 %v283, %v284
    %vm286 = vcmp.lt.s32.totalorder %v267, 1
    %vm287 = vcmp.lt.s32.totalorder %v267, 2
    %vm288 = vcmp.lt.s32.totalorder %v267, 3
    %vm289 = vcmp.lt.s32.totalorder %v267, 4
    %v290 = vsel %vm286, %v270, %v273
    %v291 = vsel %vm289, %v279, 2102212464
    %v292 = vsel %vm288, %v276, %v291
    %v293 = vsel %vm287, %v290, %v292
    %v294 = vsel %vm286, %v273, %v276
    %v295 = vsel %vm289, %v282, 920167782
    %v296 = vsel %vm288, %v279, %v295
    %v297 = vsel %vm287, %v294, %v296
    %v298 = vsel %vm286, %v276, %v279
    %v299 = vsel %vm289, %v285, 1326507024
    %v300 = vsel %vm288, %v282, %v299
    %v301 = vsel %vm287, %v298, %v300
    %v302 = vshll.u32 %v262, 8
    %v303 = vmul.u32.u64.compose %v302, %v301
    %v304 = vextract.low.u32 %v303
    %v305 = vextract.high.u32 %v303
    %v306 = vmul.u32.u64.compose %v302, %v297
    %v307 = vextract.low.u32 %v306
    %v308 = vextract.high.u32 %v306
    %v309 = vmul.u32 %v302, %v293
    %v310 = vadd.s32 %v305, %v307
    %vm311 = vc.u32 %v305, %v307
    %v312 = vadd.s32 %v308, 1
    %v313 = vsel %vm311, %v312, %v308
    %v314 = vadd.s32 %v309, %v313
    %v315 = vadd.s32 %v314, 536870912
    %v316 = vshrl.u32 %v315, 30
    %v317 = vshll.u32 %v316, 30
    %v318 = vsub.s32 %v314, %v317
    %vm319 = vcmp.lt.s32.totalorder %v318, 0
    %v320 = vsub.s32 0, %v318
    %v321 = vsel %vm319, %v320, %v318
    %v322 = vclz %v321
    %v323 = vsub.s32 %v322, 2
    %vm324 = vcmp.gt.s32.totalorder 0, %v323
    %v325 = vsel %vm324, 0, %v323
    %v326 = vsub.s32 32, %v325
    %v327 = vshll.u32 %v318, %v325
    %v328 = vshrl.u32 %v310, %v326
    %v329 = vor.u32 %v327, %v328
    %v330 = vsub.s32 4294967266, %v325
    %v331 = vadd.s32 %v330, 127
    %v332 = vshll.u32 %v331, 23
    %v333 = vor.u32 4788187, %v332
    %v334 = vand.u32 2147483647, %v333
    %v336 = vcvt.s32.f32 %v329
    %v337 = vmul.f32 %v336, %v334
    %v338 = vxor.u32 %v337, 2147483648
    %v339 = vsel %vm256, %v338, %v337
    %v340 = vsub.s32 4, %v316
    %v341 = vsel %vm256, %v340, %v316
    %v342 = vsel %vm255, %v253, %v339
    %v343 = vsel %vm255, 0, %v341
    %v344 = vcosq.f32.pop %v342
    %v345 = vsinq.f32.pop %v342
    %vm346 = vweird.f32 %v253
    %v347 = vadd.s32 %v343, 3
    %v348 = vand.u32 %v347, 3
    %vm349 = vcmp.lt.s32.totalorder %v348, 2
    %vm350 = vcmp.eq.s32.totalorder %v348, 0
    %v351 = vxor.u32 %v345, 2147483648
    %v352 = vsel %vm350, %v344, %v351
    %vm353 = vcmp.eq.s32.totalorder %v348, 2
    %v354 = vxor.u32 %v344, 2147483648
    %v355 = vsel %vm353, %v354, %v345
    %v356 = vsel %vm349, %v352, %v355
    %v357 = vsel %vm346, nan, %v356
    %s358 = scalar_lea.vmem [#allocation7], 16
    %359 = vst [vmem:[%s358] sm:$0xff] %v357
    %v360 = vand.u32 2147483647, %v253
    %vm361 = vcmp.le.f32.partialorder %v360, 0.7853982
    %vm362 = vcmp.lt.s32.totalorder %v253, 0
    %v363 = vand.u32 %v253, 2139095040
    %v364 = vshrl.u32 %v363, 23
    %v365 = vsub.s32 %v364, 127
    %v366 = vand.u32 2147483647, %v253
    %v367 = vand.u32 %v366, 8388607
    %v368 = vor.u32 %v367, 8388608
    %v369 = vsub.s32 0, %v368
    %v370 = vadd.s32 %v365, 1
    %vm371 = vcmp.gt.s32.totalorder %v370, 0
    %v372 = vsel %vm371, %v370, 0
    %v373 = vshrl.u32 %v372, 5
    %v374 = vand.u32 %v372, 31
    %v375 = vsub.s32 32, %v374
    %v376 = vshrl.u32 683565275, %v375
    %v377 = vshll.u32 683565275, %v374
    %v378 = vshrl.u32 2475754826, %v375
    %v379 = vor.u32 %v377, %v378
    %v380 = vshll.u32 2475754826, %v374
    %v381 = vshrl.u32 2131351028, %v375
    %v382 = vor.u32 %v380, %v381
    %v383 = vshll.u32 2131351028, %v374
    %v384 = vshrl.u32 2102212464, %v375
    %v385 = vor.u32 %v383, %v384
    %v386 = vshll.u32 2102212464, %v374
    %v387 = vshrl.u32 920167782, %v375
    %v388 = vor.u32 %v386, %v387
    %v389 = vshll.u32 920167782, %v374
    %v390 = vshrl.u32 1326507024, %v375
    %v391 = vor.u32 %v389, %v390
    %vm392 = vcmp.lt.s32.totalorder %v373, 1
    %vm393 = vcmp.lt.s32.totalorder %v373, 2
    %vm394 = vcmp.lt.s32.totalorder %v373, 3
    %vm395 = vcmp.lt.s32.totalorder %v373, 4
    %v396 = vsel %vm392, %v376, %v379
    %v397 = vsel %vm395, %v385, 2102212464
    %v398 = vsel %vm394, %v382, %v397
    %v399 = vsel %vm393, %v396, %v398
    %v400 = vsel %vm392, %v379, %v382
    %v401 = vsel %vm395, %v388, 920167782
    %v402 = vsel %vm394, %v385, %v401
    %v403 = vsel %vm393, %v400, %v402
    %v404 = vsel %vm392, %v382, %v385
    %v405 = vsel %vm395, %v391, 1326507024
    %v406 = vsel %vm394, %v388, %v405
    %v407 = vsel %vm393, %v404, %v406
    %v408 = vshll.u32 %v368, 8
    %v409 = vmul.u32.u64.compose %v408, %v407
    %v410 = vextract.low.u32 %v409
    %v411 = vextract.high.u32 %v409
    %v412 = vmul.u32.u64.compose %v408, %v403
    %v413 = vextract.low.u32 %v412
    %v414 = vextract.high.u32 %v412
    %v415 = vmul.u32 %v408, %v399
    %v416 = vadd.s32 %v411, %v413
    %vm417 = vc.u32 %v411, %v413
    %v418 = vadd.s32 %v414, 1
    %v419 = vsel %vm417, %v418, %v414
    %v420 = vadd.s32 %v415, %v419
    %v421 = vadd.s32 %v420, 536870912
    %v422 = vshrl.u32 %v421, 30
    %v423 = vshll.u32 %v422, 30
    %v424 = vsub.s32 %v420, %v423
    %vm425 = vcmp.lt.s32.totalorder %v424, 0
    %v426 = vsub.s32 0, %v424
    %v427 = vsel %vm425, %v426, %v424
    %v428 = vclz %v427
    %v429 = vsub.s32 %v428, 2
    %vm430 = vcmp.gt.s32.totalorder 0, %v429
    %v431 = vsel %vm430, 0, %v429
    %v432 = vsub.s32 32, %v431
    %v433 = vshll.u32 %v424, %v431
    %v434 = vshrl.u32 %v416, %v432
    %v435 = vor.u32 %v433, %v434
    %v436 = vsub.s32 4294967266, %v431
    %v437 = vadd.s32 %v436, 127
    %v438 = vshll.u32 %v437, 23
    %v439 = vor.u32 4788187, %v438
    %v440 = vand.u32 2147483647, %v439
    %v442 = vcvt.s32.f32 %v435
    %v443 = vmul.f32 %v442, %v440
    %v444 = vxor.u32 %v443, 2147483648
    %v445 = vsel %vm362, %v444, %v443
    %v446 = vsub.s32 4, %v422
    %v447 = vsel %vm362, %v446, %v422
    %v448 = vsel %vm361, %v253, %v445
    %v449 = vsel %vm361, 0, %v447
    %v450 = vcosq.f32.pop %v448
    %v451 = vsinq.f32.pop %v448
    %vm452 = vweird.f32 %v253
    %v453 = vand.u32 %v449, 3
    %vm454 = vcmp.lt.s32.totalorder %v453, 2
    %vm455 = vcmp.eq.s32.totalorder %v453, 0
    %v456 = vxor.u32 %v451, 2147483648
    %v457 = vsel %vm455, %v450, %v456
    %vm458 = vcmp.eq.s32.totalorder %v453, 2
    %v459 = vxor.u32 %v450, 2147483648
    %v460 = vsel %vm458, %v459, %v451
    %v461 = vsel %vm454, %v457, %v460
    %v462 = vsel %vm452, nan, %v461
    %s463 = scalar_lea.vmem [#allocation7], 24
    %464 = vst [vmem:[%s463] sm:$0xff] %v462
    %v465 = vstv %s38
    %v466 = vmul.f32 %v465, %v35
    %v467 = vand.u32 2147483647, %v466
    %vm468 = vcmp.le.f32.partialorder %v467, 0.7853982
    %vm469 = vcmp.lt.s32.totalorder %v466, 0
    %v470 = vand.u32 %v466, 2139095040
    %v471 = vshrl.u32 %v470, 23
    %v472 = vsub.s32 %v471, 127
    %v473 = vand.u32 2147483647, %v466
    %v474 = vand.u32 %v473, 8388607
    %v475 = vor.u32 %v474, 8388608
    %v476 = vsub.s32 0, %v475
    %v477 = vadd.s32 %v472, 1
    %vm478 = vcmp.gt.s32.totalorder %v477, 0
    %v479 = vsel %vm478, %v477, 0
    %v480 = vshrl.u32 %v479, 5
    %v481 = vand.u32 %v479, 31
    %v482 = vsub.s32 32, %v481
    %v483 = vshrl.u32 683565275, %v482
    %v484 = vshll.u32 683565275, %v481
    %v485 = vshrl.u32 2475754826, %v482
    %v486 = vor.u32 %v484, %v485
    %v487 = vshll.u32 2475754826, %v481
    %v488 = vshrl.u32 2131351028, %v482
    %v489 = vor.u32 %v487, %v488
    %v490 = vshll.u32 2131351028, %v481
    %v491 = vshrl.u32 2102212464, %v482
    %v492 = vor.u32 %v490, %v491
    %v493 = vshll.u32 2102212464, %v481
    %v494 = vshrl.u32 920167782, %v482
    %v495 = vor.u32 %v493, %v494
    %v496 = vshll.u32 920167782, %v481
    %v497 = vshrl.u32 1326507024, %v482
    %v498 = vor.u32 %v496, %v497
    %vm499 = vcmp.lt.s32.totalorder %v480, 1
    %vm500 = vcmp.lt.s32.totalorder %v480, 2
    %vm501 = vcmp.lt.s32.totalorder %v480, 3
    %vm502 = vcmp.lt.s32.totalorder %v480, 4
    %v503 = vsel %vm499, %v483, %v486
    %v504 = vsel %vm502, %v492, 2102212464
    %v505 = vsel %vm501, %v489, %v504
    %v506 = vsel %vm500, %v503, %v505
    %v507 = vsel %vm499, %v486, %v489
    %v508 = vsel %vm502, %v495, 920167782
    %v509 = vsel %vm501, %v492, %v508
    %v510 = vsel %vm500, %v507, %v509
    %v511 = vsel %vm499, %v489, %v492
    %v512 = vsel %vm502, %v498, 1326507024
    %v513 = vsel %vm501, %v495, %v512
    %v514 = vsel %vm500, %v511, %v513
    %v515 = vshll.u32 %v475, 8
    %v516 = vmul.u32.u64.compose %v515, %v514
    %v517 = vextract.low.u32 %v516
    %v518 = vextract.high.u32 %v516
    %v519 = vmul.u32.u64.compose %v515, %v510
    %v520 = vextract.low.u32 %v519
    %v521 = vextract.high.u32 %v519
    %v522 = vmul.u32 %v515, %v506
    %v523 = vadd.s32 %v518, %v520
    %vm524 = vc.u32 %v518, %v520
    %v525 = vadd.s32 %v521, 1
    %v526 = vsel %vm524, %v525, %v521
    %v527 = vadd.s32 %v522, %v526
    %v528 = vadd.s32 %v527, 536870912
    %v529 = vshrl.u32 %v528, 30
    %v530 = vshll.u32 %v529, 30
    %v531 = vsub.s32 %v527, %v530
    %vm532 = vcmp.lt.s32.totalorder %v531, 0
    %v533 = vsub.s32 0, %v531
    %v534 = vsel %vm532, %v533, %v531
    %v535 = vclz %v534
    %v536 = vsub.s32 %v535, 2
    %vm537 = vcmp.gt.s32.totalorder 0, %v536
    %v538 = vsel %vm537, 0, %v536
    %v539 = vsub.s32 32, %v538
    %v540 = vshll.u32 %v531, %v538
    %v541 = vshrl.u32 %v523, %v539
    %v542 = vor.u32 %v540, %v541
    %v543 = vsub.s32 4294967266, %v538
    %v544 = vadd.s32 %v543, 127
    %v545 = vshll.u32 %v544, 23
    %v546 = vor.u32 4788187, %v545
    %v547 = vand.u32 2147483647, %v546
    %v549 = vcvt.s32.f32 %v542
    %v550 = vmul.f32 %v549, %v547
    %v551 = vxor.u32 %v550, 2147483648
    %v552 = vsel %vm469, %v551, %v550
    %v553 = vsub.s32 4, %v529
    %v554 = vsel %vm469, %v553, %v529
    %v555 = vsel %vm468, %v466, %v552
    %v556 = vsel %vm468, 0, %v554
    %v557 = vcosq.f32.pop %v555
    %v558 = vsinq.f32.pop %v555
    %vm559 = vweird.f32 %v466
    %v560 = vadd.s32 %v556, 3
    %v561 = vand.u32 %v560, 3
    %vm562 = vcmp.lt.s32.totalorder %v561, 2
    %vm563 = vcmp.eq.s32.totalorder %v561, 0
    %v564 = vxor.u32 %v558, 2147483648
    %v565 = vsel %vm563, %v557, %v564
    %vm566 = vcmp.eq.s32.totalorder %v561, 2
    %v567 = vxor.u32 %v557, 2147483648
    %v568 = vsel %vm566, %v567, %v558
    %v569 = vsel %vm562, %v565, %v568
    %v570 = vsel %vm559, nan, %v569
    %s571 = scalar_lea.vmem [#allocation7], 32
    %572 = vst [vmem:[%s571] sm:$0xff] %v570
    %v573 = vand.u32 2147483647, %v466
    %vm574 = vcmp.le.f32.partialorder %v573, 0.7853982
    %vm575 = vcmp.lt.s32.totalorder %v466, 0
    %v576 = vand.u32 %v466, 2139095040
    %v577 = vshrl.u32 %v576, 23
    %v578 = vsub.s32 %v577, 127
    %v579 = vand.u32 2147483647, %v466
    %v580 = vand.u32 %v579, 8388607
    %v581 = vor.u32 %v580, 8388608
    %v582 = vsub.s32 0, %v581
    %v583 = vadd.s32 %v578, 1
    %vm584 = vcmp.gt.s32.totalorder %v583, 0
    %v585 = vsel %vm584, %v583, 0
    %v586 = vshrl.u32 %v585, 5
    %v587 = vand.u32 %v585, 31
    %v588 = vsub.s32 32, %v587
    %v589 = vshrl.u32 683565275, %v588
    %v590 = vshll.u32 683565275, %v587
    %v591 = vshrl.u32 2475754826, %v588
    %v592 = vor.u32 %v590, %v591
    %v593 = vshll.u32 2475754826, %v587
    %v594 = vshrl.u32 2131351028, %v588
    %v595 = vor.u32 %v593, %v594
    %v596 = vshll.u32 2131351028, %v587
    %v597 = vshrl.u32 2102212464, %v588
    %v598 = vor.u32 %v596, %v597
    %v599 = vshll.u32 2102212464, %v587
    %v600 = vshrl.u32 920167782, %v588
    %v601 = vor.u32 %v599, %v600
    %v602 = vshll.u32 920167782, %v587
    %v603 = vshrl.u32 1326507024, %v588
    %v604 = vor.u32 %v602, %v603
    %vm605 = vcmp.lt.s32.totalorder %v586, 1
    %vm606 = vcmp.lt.s32.totalorder %v586, 2
    %vm607 = vcmp.lt.s32.totalorder %v586, 3
    %vm608 = vcmp.lt.s32.totalorder %v586, 4
    %v609 = vsel %vm605, %v589, %v592
    %v610 = vsel %vm608, %v598, 2102212464
    %v611 = vsel %vm607, %v595, %v610
    %v612 = vsel %vm606, %v609, %v611
    %v613 = vsel %vm605, %v592, %v595
    %v614 = vsel %vm608, %v601, 920167782
    %v615 = vsel %vm607, %v598, %v614
    %v616 = vsel %vm606, %v613, %v615
    %v617 = vsel %vm605, %v595, %v598
    %v618 = vsel %vm608, %v604, 1326507024
    %v619 = vsel %vm607, %v601, %v618
    %v620 = vsel %vm606, %v617, %v619
    %v621 = vshll.u32 %v581, 8
    %v622 = vmul.u32.u64.compose %v621, %v620
    %v623 = vextract.low.u32 %v622
    %v624 = vextract.high.u32 %v622
    %v625 = vmul.u32.u64.compose %v621, %v616
    %v626 = vextract.low.u32 %v625
    %v627 = vextract.high.u32 %v625
    %v628 = vmul.u32 %v621, %v612
    %v629 = vadd.s32 %v624, %v626
    %vm630 = vc.u32 %v624, %v626
    %v631 = vadd.s32 %v627, 1
    %v632 = vsel %vm630, %v631, %v627
    %v633 = vadd.s32 %v628, %v632
    %v634 = vadd.s32 %v633, 536870912
    %v635 = vshrl.u32 %v634, 30
    %v636 = vshll.u32 %v635, 30
    %v637 = vsub.s32 %v633, %v636
    %vm638 = vcmp.lt.s32.totalorder %v637, 0
    %v639 = vsub.s32 0, %v637
    %v640 = vsel %vm638, %v639, %v637
    %v641 = vclz %v640
    %v642 = vsub.s32 %v641, 2
    %vm643 = vcmp.gt.s32.totalorder 0, %v642
    %v644 = vsel %vm643, 0, %v642
    %v645 = vsub.s32 32, %v644
    %v646 = vshll.u32 %v637, %v644
    %v647 = vshrl.u32 %v629, %v645
    %v648 = vor.u32 %v646, %v647
    %v649 = vsub.s32 4294967266, %v644
    %v650 = vadd.s32 %v649, 127
    %v651 = vshll.u32 %v650, 23
    %v652 = vor.u32 4788187, %v651
    %v653 = vand.u32 2147483647, %v652
    %v655 = vcvt.s32.f32 %v648
    %v656 = vmul.f32 %v655, %v653
    %v657 = vxor.u32 %v656, 2147483648
    %v658 = vsel %vm575, %v657, %v656
    %v659 = vsub.s32 4, %v635
    %v660 = vsel %vm575, %v659, %v635
    %v661 = vsel %vm574, %v466, %v658
    %v662 = vsel %vm574, 0, %v660
    %v663 = vcosq.f32.pop %v661
    %v664 = vsinq.f32.pop %v661
    %vm665 = vweird.f32 %v466
    %v666 = vand.u32 %v662, 3
    %vm667 = vcmp.lt.s32.totalorder %v666, 2
    %vm668 = vcmp.eq.s32.totalorder %v666, 0
    %v669 = vxor.u32 %v664, 2147483648
    %v670 = vsel %vm668, %v663, %v669
    %vm671 = vcmp.eq.s32.totalorder %v666, 2
    %v672 = vxor.u32 %v663, 2147483648
    %v673 = vsel %vm671, %v672, %v664
    %v674 = vsel %vm667, %v670, %v673
    %v675 = vsel %vm665, nan, %v674
    %s676 = scalar_lea.vmem [#allocation7], 40
    %677 = vst [vmem:[%s676] sm:$0xff] %v675
    %v678 = vstv %s39
    %v679 = vmul.f32 %v678, %v35
    %v680 = vand.u32 2147483647, %v679
    %vm681 = vcmp.le.f32.partialorder %v680, 0.7853982
    %vm682 = vcmp.lt.s32.totalorder %v679, 0
    %v683 = vand.u32 %v679, 2139095040
    %v684 = vshrl.u32 %v683, 23
    %v685 = vsub.s32 %v684, 127
    %v686 = vand.u32 2147483647, %v679
    %v687 = vand.u32 %v686, 8388607
    %v688 = vor.u32 %v687, 8388608
    %v689 = vsub.s32 0, %v688
    %v690 = vadd.s32 %v685, 1
    %vm691 = vcmp.gt.s32.totalorder %v690, 0
    %v692 = vsel %vm691, %v690, 0
    %v693 = vshrl.u32 %v692, 5
    %v694 = vand.u32 %v692, 31
    %v695 = vsub.s32 32, %v694
    %v696 = vshrl.u32 683565275, %v695
    %v697 = vshll.u32 683565275, %v694
    %v698 = vshrl.u32 2475754826, %v695
    %v699 = vor.u32 %v697, %v698
    %v700 = vshll.u32 2475754826, %v694
    %v701 = vshrl.u32 2131351028, %v695
    %v702 = vor.u32 %v700, %v701
    %v703 = vshll.u32 2131351028, %v694
    %v704 = vshrl.u32 2102212464, %v695
    %v705 = vor.u32 %v703, %v704
    %v706 = vshll.u32 2102212464, %v694
    %v707 = vshrl.u32 920167782, %v695
    %v708 = vor.u32 %v706, %v707
    %v709 = vshll.u32 920167782, %v694
    %v710 = vshrl.u32 1326507024, %v695
    %v711 = vor.u32 %v709, %v710
    %vm712 = vcmp.lt.s32.totalorder %v693, 1
    %vm713 = vcmp.lt.s32.totalorder %v693, 2
    %vm714 = vcmp.lt.s32.totalorder %v693, 3
    %vm715 = vcmp.lt.s32.totalorder %v693, 4
    %v716 = vsel %vm712, %v696, %v699
    %v717 = vsel %vm715, %v705, 2102212464
    %v718 = vsel %vm714, %v702, %v717
    %v719 = vsel %vm713, %v716, %v718
    %v720 = vsel %vm712, %v699, %v702
    %v721 = vsel %vm715, %v708, 920167782
    %v722 = vsel %vm714, %v705, %v721
    %v723 = vsel %vm713, %v720, %v722
    %v724 = vsel %vm712, %v702, %v705
    %v725 = vsel %vm715, %v711, 1326507024
    %v726 = vsel %vm714, %v708, %v725
    %v727 = vsel %vm713, %v724, %v726
    %v728 = vshll.u32 %v688, 8
    %v729 = vmul.u32.u64.compose %v728, %v727
    %v730 = vextract.low.u32 %v729
    %v731 = vextract.high.u32 %v729
    %v732 = vmul.u32.u64.compose %v728, %v723
    %v733 = vextract.low.u32 %v732
    %v734 = vextract.high.u32 %v732
    %v735 = vmul.u32 %v728, %v719
    %v736 = vadd.s32 %v731, %v733
    %vm737 = vc.u32 %v731, %v733
    %v738 = vadd.s32 %v734, 1
    %v739 = vsel %vm737, %v738, %v734
    %v740 = vadd.s32 %v735, %v739
    %v741 = vadd.s32 %v740, 536870912
    %v742 = vshrl.u32 %v741, 30
    %v743 = vshll.u32 %v742, 30
    %v744 = vsub.s32 %v740, %v743
    %vm745 = vcmp.lt.s32.totalorder %v744, 0
    %v746 = vsub.s32 0, %v744
    %v747 = vsel %vm745, %v746, %v744
    %v748 = vclz %v747
    %v749 = vsub.s32 %v748, 2
    %vm750 = vcmp.gt.s32.totalorder 0, %v749
    %v751 = vsel %vm750, 0, %v749
    %v752 = vsub.s32 32, %v751
    %v753 = vshll.u32 %v744, %v751
    %v754 = vshrl.u32 %v736, %v752
    %v755 = vor.u32 %v753, %v754
    %v756 = vsub.s32 4294967266, %v751
    %v757 = vadd.s32 %v756, 127
    %v758 = vshll.u32 %v757, 23
    %v759 = vor.u32 4788187, %v758
    %v760 = vand.u32 2147483647, %v759
    %v762 = vcvt.s32.f32 %v755
    %v763 = vmul.f32 %v762, %v760
    %v764 = vxor.u32 %v763, 2147483648
    %v765 = vsel %vm682, %v764, %v763
    %v766 = vsub.s32 4, %v742
    %v767 = vsel %vm682, %v766, %v742
    %v768 = vsel %vm681, %v679, %v765
    %v769 = vsel %vm681, 0, %v767
    %v770 = vcosq.f32.pop %v768
    %v771 = vsinq.f32.pop %v768
    %vm772 = vweird.f32 %v679
    %v773 = vadd.s32 %v769, 3
    %v774 = vand.u32 %v773, 3
    %vm775 = vcmp.lt.s32.totalorder %v774, 2
    %vm776 = vcmp.eq.s32.totalorder %v774, 0
    %v777 = vxor.u32 %v771, 2147483648
    %v778 = vsel %vm776, %v770, %v777
    %vm779 = vcmp.eq.s32.totalorder %v774, 2
    %v780 = vxor.u32 %v770, 2147483648
    %v781 = vsel %vm779, %v780, %v771
    %v782 = vsel %vm775, %v778, %v781
    %v783 = vsel %vm772, nan, %v782
    %s784 = scalar_lea.vmem [#allocation7], 48
    %785 = vst [vmem:[%s784] sm:$0xff] %v783
    %v786 = vand.u32 2147483647, %v679
    %vm787 = vcmp.le.f32.partialorder %v786, 0.7853982
    %vm788 = vcmp.lt.s32.totalorder %v679, 0
    %v789 = vand.u32 %v679, 2139095040
    %v790 = vshrl.u32 %v789, 23
    %v791 = vsub.s32 %v790, 127
    %v792 = vand.u32 2147483647, %v679
    %v793 = vand.u32 %v792, 8388607
    %v794 = vor.u32 %v793, 8388608
    %v795 = vsub.s32 0, %v794
    %v796 = vadd.s32 %v791, 1
    %vm797 = vcmp.gt.s32.totalorder %v796, 0
    %v798 = vsel %vm797, %v796, 0
    %v799 = vshrl.u32 %v798, 5
    %v800 = vand.u32 %v798, 31
    %v801 = vsub.s32 32, %v800
    %v802 = vshrl.u32 683565275, %v801
    %v803 = vshll.u32 683565275, %v800
    %v804 = vshrl.u32 2475754826, %v801
    %v805 = vor.u32 %v803, %v804
    %v806 = vshll.u32 2475754826, %v800
    %v807 = vshrl.u32 2131351028, %v801
    %v808 = vor.u32 %v806, %v807
    %v809 = vshll.u32 2131351028, %v800
    %v810 = vshrl.u32 2102212464, %v801
    %v811 = vor.u32 %v809, %v810
    %v812 = vshll.u32 2102212464, %v800
    %v813 = vshrl.u32 920167782, %v801
    %v814 = vor.u32 %v812, %v813
    %v815 = vshll.u32 920167782, %v800
    %v816 = vshrl.u32 1326507024, %v801
    %v817 = vor.u32 %v815, %v816
    %vm818 = vcmp.lt.s32.totalorder %v799, 1
    %vm819 = vcmp.lt.s32.totalorder %v799, 2
    %vm820 = vcmp.lt.s32.totalorder %v799, 3
    %vm821 = vcmp.lt.s32.totalorder %v799, 4
    %v822 = vsel %vm818, %v802, %v805
    %v823 = vsel %vm821, %v811, 2102212464
    %v824 = vsel %vm820, %v808, %v823
    %v825 = vsel %vm819, %v822, %v824
    %v826 = vsel %vm818, %v805, %v808
    %v827 = vsel %vm821, %v814, 920167782
    %v828 = vsel %vm820, %v811, %v827
    %v829 = vsel %vm819, %v826, %v828
    %v830 = vsel %vm818, %v808, %v811
    %v831 = vsel %vm821, %v817, 1326507024
    %v832 = vsel %vm820, %v814, %v831
    %v833 = vsel %vm819, %v830, %v832
    %v834 = vshll.u32 %v794, 8
    %v835 = vmul.u32.u64.compose %v834, %v833
    %v836 = vextract.low.u32 %v835
    %v837 = vextract.high.u32 %v835
    %v838 = vmul.u32.u64.compose %v834, %v829
    %v839 = vextract.low.u32 %v838
    %v840 = vextract.high.u32 %v838
    %v841 = vmul.u32 %v834, %v825
    %v842 = vadd.s32 %v837, %v839
    %vm843 = vc.u32 %v837, %v839
    %v844 = vadd.s32 %v840, 1
    %v845 = vsel %vm843, %v844, %v840
    %v846 = vadd.s32 %v841, %v845
    %v847 = vadd.s32 %v846, 536870912
    %v848 = vshrl.u32 %v847, 30
    %v849 = vshll.u32 %v848, 30
    %v850 = vsub.s32 %v846, %v849
    %vm851 = vcmp.lt.s32.totalorder %v850, 0
    %v852 = vsub.s32 0, %v850
    %v853 = vsel %vm851, %v852, %v850
    %v854 = vclz %v853
    %v855 = vsub.s32 %v854, 2
    %vm856 = vcmp.gt.s32.totalorder 0, %v855
    %v857 = vsel %vm856, 0, %v855
    %v858 = vsub.s32 32, %v857
    %v859 = vshll.u32 %v850, %v857
    %v860 = vshrl.u32 %v842, %v858
    %v861 = vor.u32 %v859, %v860
    %v862 = vsub.s32 4294967266, %v857
    %v863 = vadd.s32 %v862, 127
    %v864 = vshll.u32 %v863, 23
    %v865 = vor.u32 4788187, %v864
    %v866 = vand.u32 2147483647, %v865
    %v868 = vcvt.s32.f32 %v861
    %v869 = vmul.f32 %v868, %v866
    %v870 = vxor.u32 %v869, 2147483648
    %v871 = vsel %vm788, %v870, %v869
    %v872 = vsub.s32 4, %v848
    %v873 = vsel %vm788, %v872, %v848
    %v874 = vsel %vm787, %v679, %v871
    %v875 = vsel %vm787, 0, %v873
    %v876 = vcosq.f32.pop %v874
    %v877 = vsinq.f32.pop %v874
    %vm878 = vweird.f32 %v679
    %v879 = vand.u32 %v875, 3
    %vm880 = vcmp.lt.s32.totalorder %v879, 2
    %vm881 = vcmp.eq.s32.totalorder %v879, 0
    %v882 = vxor.u32 %v877, 2147483648
    %v883 = vsel %vm881, %v876, %v882
    %vm884 = vcmp.eq.s32.totalorder %v879, 2
    %v885 = vxor.u32 %v876, 2147483648
    %v886 = vsel %vm884, %v885, %v877
    %v887 = vsel %vm880, %v883, %v886
    %v888 = vsel %vm878, nan, %v887
    %s889 = scalar_lea.vmem [#allocation7], 56
    %890 = vst [vmem:[%s889] sm:$0xff] %v888
    // Predicated region
    $region18: #{tpu_custom_call.1} parent=1 // pred_check
      _
    $region19: #{tpu_custom_call.1} parent=1 // pred_check_branch
      %892 = sbr.rel (0) target = $region21
    $region20: #{tpu_custom_call.1} parent=1 // pred_region
      %s894 = ssub.s32 1024, 1024
      %895 = vsyncadd [#allocation4], %s894
      %s896 = sshll.u32 [#allocation7], 4
      %s897 = int_to_ptr.vmem [resolvable:$true] %s896
      %902 = dma.vmem_to_hbm [thread:$0]  %s897, 1024, %s2, [#allocation4], 128, 128, 8
    $region21: #{tpu_custom_call.1} parent=1 // pred_fallthru
      _
    // Predicated region
    $region22: #{tpu_custom_call.1} parent=1 // pred_check
      _
    $region23: #{tpu_custom_call.1} parent=1 // pred_check_branch
      %904 = sbr.rel (0) target = $region25
    $region24: #{tpu_custom_call.1} parent=1 // pred_region
      %905 = dma.done [#allocation4], 1024
    $region25: #{tpu_custom_call.1} parent=1 // pred_fallthru
      _
    %906 = vsyncpa [#allocation3], 1
    %907 = vsyncpa [#allocation4], 1
    %908 = vsyncpa [#allocation5], 1

</llo_original>
